<compile_context>
chip_gen: v6e
topology: v6e:2x2x1
jax: 0.10.0
libtpu: 0.0.40
codegen_flags: <defaults>
</compile_context>

<pallas_src>
import jax
import jax.numpy as jnp
from jax.experimental import pallas as pl
from jax.experimental.pallas import tpu as pltpu


def make_linear_kernel(in_features: int):
    """VPU-only linear kernel, out_features == 1, batch on the lane axis."""

    def linear_kernel(x_ref, w_ref, b_ref, o_ref):
        # x_ref: (IN, B_TILE) in VMEM  (lane-dense rows, sublane row-select)
        # w_ref: (IN,)        in SMEM  (scalar reads)
        # b_ref: (1,)         in SMEM  (scalar read)
        # o_ref: (1, B_TILE)  in VMEM  (lane-dense, unmasked store)
        acc = x_ref[0:1, :] * w_ref[0]
        for j in range(1, in_features):  # IN is tiny -> trace-time unroll
            acc = acc + x_ref[j : j + 1, :] * w_ref[j]
        o_ref[...] = (acc + b_ref[0]).astype(o_ref.dtype)

    return linear_kernel


def linear_pallas(x, w, b, *, max_b_tile=8192):
    """x: (B, IN) f32, w: (OUT=1, IN) f32, b: (OUT=1,) f32 -> (B, OUT) f32."""
    B, IN = x.shape
    OUT = w.shape[0]
    assert OUT == 1, "VPU path specialized for out_features == 1 (nn.Linear(2, 1))"
    assert w.shape == (OUT, IN) and b.shape == (OUT,)

    # Lane-dense batch tiling: tile width is a multiple of 128 lanes, capped so
    # (IN, b_tile) f32 x-blocks (double-buffered) stay tiny even under v7x's
    # 64 MiB VMEM.  With IN=2, an 8192-lane tile is 64 KiB.
    b_tile = min(max_b_tile, 128 * pl.cdiv(B, 128))
    n_tiles = pl.cdiv(B, b_tile)
    b_pad = n_tiles * b_tile

    # Wrapper-side layout plumbing only: transpose batch onto the lane axis,
    # zero-pad to the tile multiple, flatten w to 1-D for a compact SMEM ref.
    x_t = x.T  # (IN, B)
    if b_pad != B:
        x_t = jnp.pad(x_t, ((0, 0), (0, b_pad - B)))
    w_flat = w.reshape(IN)

    y_t = pl.pallas_call(
        make_linear_kernel(IN),
        out_shape=jax.ShapeDtypeStruct((OUT, b_pad), x.dtype),
        grid=(n_tiles,),
        in_specs=[
            pl.BlockSpec((IN, b_tile), lambda i: (0, i)),            # x tile in VMEM
            pl.BlockSpec(memory_space=pltpu.MemorySpace.SMEM),       # w scalars
            pl.BlockSpec(memory_space=pltpu.MemorySpace.SMEM),       # b scalar
        ],
        out_specs=pl.BlockSpec((OUT, b_tile), lambda i: (0, i)),     # lane-dense out
        compiler_params=pltpu.CompilerParams(
            dimension_semantics=("parallel",),  # shard batch tiles across TCs (v7x)
        ),
    )(x_t, w_flat, b)

    # Back to PyTorch layout: (B, OUT).
    return y_t[:, :B].T


if __name__ == "__main__":
    key = jax.random.PRNGKey(0)
    kx, kw, kb = jax.random.split(key, 3)

    IN_FEATURES, OUT_FEATURES = 2, 1
    BATCH = 8

    # Deterministic parameter init matching nn.Linear's shapes
    # (uniform in [-1/sqrt(in_features), 1/sqrt(in_features)], like PyTorch default).
    bound = 1.0 / jnp.sqrt(jnp.float32(IN_FEATURES))
    w = jax.random.uniform(
        kw, (OUT_FEATURES, IN_FEATURES), jnp.float32, minval=-bound, maxval=bound
    )
    b = jax.random.uniform(
        kb, (OUT_FEATURES,), jnp.float32, minval=-bound, maxval=bound
    )

    x = jax.random.normal(kx, (BATCH, IN_FEATURES), jnp.float32)

    y = linear_pallas(x, w, b)
    jax.block_until_ready(y)

    # Cross-check against plain-JAX reference of the same math.
    y_ref = x @ w.T + b
    assert y.shape == (BATCH, OUT_FEATURES)
    assert jnp.allclose(y, y_ref, atol=1e-5, rtol=1e-5)

    print("KERNEL_OK")
</pallas_src>

<mosaic_0001>
module attributes {stable_mosaic.version = 11 : i64} {
  func.func @linear_kernel(%arg0: i32, %arg1: memref<2x128xf32, #tpu.memory_space<vmem>>, %arg2: memref<2xf32, #tpu.memory_space<smem>>, %arg3: memref<1xf32, #tpu.memory_space<smem>>, %arg4: memref<1x128xf32, #tpu.memory_space<vmem>>) attributes {dimension_semantics = [#tpu.dimension_semantics<parallel>], iteration_bounds = array<i64: 1>, scalar_prefetch = 0 : i64, scratch_operands = 0 : i64, tpu.core_type = #tpu.core_type<tc>, window_params = [{transform_indices = @transform_0, window_bounds = array<i64: 2, 128>}, {transform_indices = @transform_1, window_bounds = array<i64: 2>}, {transform_indices = @transform_2, window_bounds = array<i64: 1>}, {transform_indices = @transform_3, window_bounds = array<i64: 1, 128>}]} {
    %c0 = arith.constant 0 : index
    %c0_0 = arith.constant 0 : index
    %0 = vector.load %arg1[%c0, %c0_0] : memref<2x128xf32, #tpu.memory_space<vmem>>, vector<1x128xf32>
    %c0_1 = arith.constant 0 : index
    %1 = memref.load %arg2[%c0_1] : memref<2xf32, #tpu.memory_space<smem>>
    %2 = vector.broadcast %1 : f32 to vector<1x128xf32>
    %3 = arith.mulf %0, %2 : vector<1x128xf32>
    %c1 = arith.constant 1 : index
    %c0_2 = arith.constant 0 : index
    %4 = vector.load %arg1[%c1, %c0_2] : memref<2x128xf32, #tpu.memory_space<vmem>>, vector<1x128xf32>
    %c1_3 = arith.constant 1 : index
    %5 = memref.load %arg2[%c1_3] : memref<2xf32, #tpu.memory_space<smem>>
    %6 = vector.broadcast %5 : f32 to vector<1x128xf32>
    %7 = arith.mulf %4, %6 : vector<1x128xf32>
    %8 = arith.addf %3, %7 : vector<1x128xf32>
    %c0_4 = arith.constant 0 : index
    %9 = memref.load %arg3[%c0_4] : memref<1xf32, #tpu.memory_space<smem>>
    %10 = vector.broadcast %9 : f32 to vector<1x128xf32>
    %11 = arith.addf %8, %10 : vector<1x128xf32>
    %c0_5 = arith.constant 0 : index
    %c0_6 = arith.constant 0 : index
    %12 = vector.load %arg4[%c0_5, %c0_6] : memref<1x128xf32, #tpu.memory_space<vmem>>, vector<1x128xf32>
    tpu.vector_store %arg4[%c0_5, %c0_6], %11 {strides = array<i32>} : memref<1x128xf32, #tpu.memory_space<vmem>>, vector<1x128xf32>,
    return
  }
  func.func @transform_0(%arg0: i32) -> (i32, i32) {
    %c0_i32 = arith.constant 0 : i32
    %c0_i32_0 = arith.constant 0 : i32
    return %c0_i32, %arg0 : i32, i32
  }
  func.func @transform_1(%arg0: i32) -> i32 {
    %c0_i32 = arith.constant 0 : i32
    %c0_i32_0 = arith.constant 0 : i32
    return %c0_i32 : i32
  }
  func.func @transform_2(%arg0: i32) -> i32 {
    %c0_i32 = arith.constant 0 : i32
    %c0_i32_0 = arith.constant 0 : i32
    return %c0_i32 : i32
  }
  func.func @transform_3(%arg0: i32) -> (i32, i32) {
    %c0_i32 = arith.constant 0 : i32
    %c0_i32_0 = arith.constant 0 : i32
    return %c0_i32, %arg0 : i32, i32
  }
}

</mosaic_0001>

<llo_original>
// kernel: tpu_custom_call.1
$region0: #{tpu_custom_call.1}
  #allocation0 [shape = 'u32[]', space=smem, size = 0x4, offset = 0x4, fixed_abs, tag = 'smem constant byte address 0x4 - core index']
  #allocation1 [shape = 'u32[144,128]{1,0:T(1,128)}', space=vmem, size = 0x12000, scoped, tag = 'internal scratch']
  #allocation2 [shape = 'f32[1]{0:T(128)S(6)}', space=smem, size = 0x200, scoped, tag = 'scoped memory for tpu_custom_call.1']
  %s0 = inlined_call_operand.vmem [shape: f32[2,128], index: 0, kind: input, shape index: {}]
  %s1 = inlined_call_operand.vmem [shape: f32[2], index: 1, kind: input, shape index: {}]
  %s2 = inlined_call_operand.<no memory space> [shape: f32[1], index: 2, kind: input, shape index: {}]
  %s3 = inlined_call_operand.hbm [shape: f32[1,128], index: 3, kind: output, shape index: {}]
  %s4 = sld [smem:[#allocation0]]
  $region26: #{tpu_custom_call.1} parent=0
    _
  %s6 = ssub.s32 1, %s4
  %s7 = scalar_select 0, %s6, %s4
  %8 = sst [smem:[#allocation2]] %s2
  $region1: #{tpu_custom_call.1} parent=0
    #allocation3 [shape = 'u8[512]{0}', space=smem, size = 0x200, scoped, tag = 'input window, operand 1, single buffered']
    #allocation4 [shape = 's32[1]{0}', space=sflag, size = 0x4, scoped, tag = 'scoped memory for tpu_custom_call.1']
    #allocation5 [shape = 's32[1]{0}', space=sflag, size = 0x4, scoped, tag = 'scoped memory for tpu_custom_call.1']
    #allocation6 [shape = 'u8[512]{0}', space=vmem, size = 0x400, scoped, tag = 'output window, operand 0, single buffered']
    %9 = vsyncpa [#allocation5], 0
    %10 = vsyncpa [#allocation4], 0
    // Predicated region
    $region2: #{tpu_custom_call.1} parent=1 // pred_check
      _
    $region3: #{tpu_custom_call.1} parent=1 // pred_check_branch
      %12 = sbr.rel (0) target = $region5
    $region4: #{tpu_custom_call.1} parent=1 // pred_region
      _
    $region5: #{tpu_custom_call.1} parent=1 // pred_fallthru
      _
    // Predicated region
    $region6: #{tpu_custom_call.1} parent=1 // pred_check
      _
    $region7: #{tpu_custom_call.1} parent=1 // pred_check_branch
      %14 = sbr.rel (0) target = $region9
    $region8: #{tpu_custom_call.1} parent=1 // pred_region
      %s16 = ssub.s32 16, 16
      %17 = vsyncadd [#allocation5], %s16
      %s19 = sshll.u32 %s1, 4
      %s20 = int_to_ptr.vmem [resolvable:$true] %s19
      %22 = dma.vmem_to_smem %s20, 16, [#allocation3], [#allocation5]
    $region9: #{tpu_custom_call.1} parent=1 // pred_fallthru
      _
    // Predicated region
    $region10: #{tpu_custom_call.1} parent=1 // pred_check
      _
    $region11: #{tpu_custom_call.1} parent=1 // pred_check_branch
      %24 = sbr.rel (0) target = $region13
    $region12: #{tpu_custom_call.1} parent=1 // pred_region
      _
    $region13: #{tpu_custom_call.1} parent=1 // pred_fallthru
      _
    // Predicated region
    $region14: #{tpu_custom_call.1} parent=1 // pred_check
      _
    $region15: #{tpu_custom_call.1} parent=1 // pred_check_branch
      %26 = sbr.rel (0) target = $region17
    $region16: #{tpu_custom_call.1} parent=1 // pred_region
      %27 = dma.done [#allocation5], 16
    $region17: #{tpu_custom_call.1} parent=1 // pred_fallthru
      _
    %28 = sfence
    %v29 = vld [vmem:[%s0] sm:$0x1]
    %s30 = sld [smem:[#allocation3]]
    %v31 = vstv %s30
    %v32 = vmul.f32 %v29, %v31
    %v33 = vld [vmem:[%s0 + $0x1] sm:$0x1]
    %s34 = sld [smem:[#allocation3 + $0x1]]
    %v35 = vstv %s34
    %v36 = vmul.f32 %v33, %v35
    %v37 = vadd.f32 %v32, %v36
    %s38 = sld [smem:[#allocation2]]
    %v39 = vstv %s38
    %v40 = vadd.f32 %v37, %v39
    %41 = vst [vmem:[#allocation6] sm:$0x1] %v40
    // Predicated region
    $region18: #{tpu_custom_call.1} parent=1 // pred_check
      _
    $region19: #{tpu_custom_call.1} parent=1 // pred_check_branch
      %43 = sbr.rel (0) target = $region21
    $region20: #{tpu_custom_call.1} parent=1 // pred_region
      %s45 = ssub.s32 16, 16
      %46 = vsyncadd [#allocation4], %s45
      %s48 = sshll.u32 [#allocation6], 4
      %s49 = int_to_ptr.vmem [resolvable:$true] %s48
      %51 = dma.vmem_to_hbm [thread:$0]  %s49, 16, %s3, [#allocation4]
    $region21: #{tpu_custom_call.1} parent=1 // pred_fallthru
      _
    // Predicated region
    $region22: #{tpu_custom_call.1} parent=1 // pred_check
      _
    $region23: #{tpu_custom_call.1} parent=1 // pred_check_branch
      %53 = sbr.rel (0) target = $region25
    $region24: #{tpu_custom_call.1} parent=1 // pred_region
      %54 = dma.done [#allocation4], 16
    $region25: #{tpu_custom_call.1} parent=1 // pred_fallthru
      _
    %55 = vsyncpa [#allocation4], 1
    %56 = vsyncpa [#allocation5], 1

</llo_original>
